<compile_context>
chip_gen: v5e
topology: v5e:2x2
jax: 0.10.0
libtpu: 0.0.40
codegen_flags: <defaults>
</compile_context>

<pallas_src>
import jax
import jax.numpy as jnp
from jax.experimental import pallas as pl
from jax.experimental.pallas import tpu as pltpu


def _round_up(x: int, m: int) -> int:
    return ((x + m - 1) // m) * m


# bf16 weight size below which the single-block (no K loop) kernel is used.
_SINGLE_BLOCK_WEIGHT_BYTES = 4 * 1024 * 1024


# ----------------------------------------------------------------------------
# Init-time parameter packing (done ONCE, like module __init__ / state setup).
# ----------------------------------------------------------------------------
def prepack_feature_params(weight, bias):
    """Cast weight to bf16 and (for the tiled path) pad D to a multiple of 128.

    weight : (D, F) float32
    bias   : (1, F) float32
    Returns a dict consumed by `manual_feature_extractor`.
    """
    D, F = weight.shape
    w_bf16 = weight.astype(jnp.bfloat16)
    b_f32 = bias.reshape(1, F).astype(jnp.float32)

    if D * F * 2 <= _SINGLE_BLOCK_WEIGHT_BYTES:
        # Small weight: single-block kernel, no padding of any kind.
        return dict(mode="single", w=w_bf16, b=b_f32, D=D, F=F)

    # Tiled path: pad only the reduction dim, and only to a multiple of 128.
    Dp = _round_up(D, 128)
    if Dp != D:
        w_bf16 = jnp.pad(w_bf16, ((0, Dp - D), (0, 0)))
    # K tile: largest candidate that divides the 128-padded D exactly.
    tk = next(t for t in (2048, 1024, 512, 256, 128) if Dp % t == 0)
    # F tile: keep the full F extent (no padding); only split very wide,
    # 128-aligned F so the parallel axis has >= 2 tiles (v7x megacore).
    if F > 1024 and F % 128 == 0:
        tn = next(t for t in (512, 256, 128) if F % t == 0)
    else:
        tn = F
    return dict(mode="tiled", w=w_bf16, b=b_f32, D=D, F=F, Dp=Dp, tk=tk, tn=tn)


# ----------------------------------------------------------------------------
# Kernels
# ----------------------------------------------------------------------------
def _single_block_kernel(x_ref, w_ref, b_ref, o_ref):
    # One invocation: whole (small) weight resident in VMEM, no K loop.
    x = x_ref[...].astype(jnp.bfloat16)
    o_ref[...] = (
        jnp.dot(x, w_ref[...], preferred_element_type=jnp.float32) + b_ref[...]
    ).astype(o_ref.dtype)


def _tiled_kernel(x_ref, w_ref, b_ref, o_ref):
    # grid = (F tiles, K tiles); K (reduction over D) is last / "arbitrary".
    # The f32 output block stays resident across k -> accumulate directly.
    k = pl.program_id(1)

    @pl.when(k == 0)
    def _():
        o_ref[...] = jnp.zeros_like(o_ref)

    o_ref[...] += jnp.dot(
        x_ref[...].astype(jnp.bfloat16),
        w_ref[...],
        preferred_element_type=jnp.float32,
    )

    @pl.when(k == pl.num_programs(1) - 1)
    def _():
        o_ref[...] += b_ref[...]   # bias added exactly once, in the K epilogue


# ----------------------------------------------------------------------------
# Per-call wrapper (forward pass): phi(X) = flatten(X) @ W + b
# ----------------------------------------------------------------------------
def manual_feature_extractor(x_nchw, packed):
    """x_nchw: (B, C, H, W) float32.  Returns (B, F) float32."""
    B = x_nchw.shape[0]
    D, F = packed["D"], packed["F"]
    # Row-major flatten (matches torch.flatten); contiguous reshape, no copy.
    x_flat = x_nchw.reshape(B, D).astype(jnp.float32)
    Bp = _round_up(max(B, 8), 8)

    if packed["mode"] == "single":
        x_pad = x_flat if Bp == B else jnp.pad(x_flat, ((0, Bp - B), (0, 0)))
        out = pl.pallas_call(
            _single_block_kernel,
            out_shape=jax.ShapeDtypeStruct((Bp, F), jnp.float32),
        )(x_pad, packed["w"], packed["b"])
        return out[:B]

    Dp, tk, tn = packed["Dp"], packed["tk"], packed["tn"]
    x_pad = jnp.pad(x_flat, ((0, Bp - B), (0, Dp - D)))
    grid = (F // tn, Dp // tk)

    cost = pl.CostEstimate(
        flops=2 * Bp * Dp * F,
        transcendentals=0,
        bytes_accessed=(
            4 * Bp * Dp * (F // tn)   # f32 x, streamed once per F tile
            + 2 * Dp * F              # bf16 weight, streamed once
            + 4 * F                   # f32 bias
            + 4 * Bp * F              # f32 output
        ),
    )

    out = pl.pallas_call(
        _tiled_kernel,
        out_shape=jax.ShapeDtypeStruct((Bp, F), jnp.float32),
        grid_spec=pltpu.PrefetchScalarGridSpec(
            num_scalar_prefetch=0,
            grid=grid,
            in_specs=[
                pl.BlockSpec((Bp, tk), lambda j, k: (0, k)),   # x tile (f32)
                pl.BlockSpec((tk, tn), lambda j, k: (k, j)),   # weight tile (bf16)
                pl.BlockSpec((1, tn), lambda j, k: (0, j)),    # bias tile
            ],
            out_specs=pl.BlockSpec((Bp, tn), lambda j, k: (0, j)),
        ),
        compiler_params=pltpu.CompilerParams(
            dimension_semantics=("parallel", "arbitrary"),
            vmem_limit_bytes=64 * 1024 * 1024,  # headroom for big tiles (v5e default is 16 MiB)
        ),
        cost_estimate=cost,
    )(x_pad, packed["w"], packed["b"])
    return out[:B]


if __name__ == "__main__":
    # Small shapes consistent with the module's (input_shape, num_features) ctor.
    B, C, H, W = 2, 4, 16, 16          # input_shape = (4, 16, 16)
    num_features = 32                  # num_features = 32
    D = C * H * W

    key = jax.random.PRNGKey(0)
    kx, kw, kb = jax.random.split(key, 3)

    x = jax.random.normal(kx, (B, C, H, W), dtype=jnp.float32)
    weight = jax.random.normal(kw, (D, num_features), dtype=jnp.float32) * 0.02
    bias = jax.random.normal(kb, (1, num_features), dtype=jnp.float32) * 0.01

    # Init-time packing (once, hoisted out of the per-call path).
    packed = prepack_feature_params(weight, bias)

    phi = manual_feature_extractor(x, packed)
    jax.block_until_ready(phi)

    # Reference check against plain JAX (same semantics as torch flatten + linear).
    # Tolerance loosened to account for the deliberate bf16 weight/activation cast.
    ref = x.reshape(B, D) @ weight + bias
    assert phi.shape == (B, num_features)
    assert jnp.allclose(phi, ref, atol=3e-2, rtol=3e-2), (
        float(jnp.max(jnp.abs(phi - ref))))

    print("KERNEL_OK")
</pallas_src>

<mosaic_0001>
module attributes {stable_mosaic.version = 11 : i64} {
  func.func @_single_block_kernel(%arg0: memref<8x1024xf32, #tpu.memory_space<vmem>>, %arg1: memref<1024x32xbf16, #tpu.memory_space<vmem>>, %arg2: memref<1x32xf32, #tpu.memory_space<vmem>>, %arg3: memref<8x32xf32, #tpu.memory_space<vmem>>) attributes {dimension_semantics = [], scalar_prefetch = 0 : i64, scratch_operands = 0 : i64, tpu.core_type = #tpu.core_type<tc>} {
    %c0 = arith.constant 0 : index
    %c0_0 = arith.constant 0 : index
    %0 = vector.load %arg0[%c0, %c0_0] : memref<8x1024xf32, #tpu.memory_space<vmem>>, vector<8x1024xf32>
    %1 = arith.truncf %0 : vector<8x1024xf32> to vector<8x1024xbf16>
    %c0_1 = arith.constant 0 : index
    %c0_2 = arith.constant 0 : index
    %2 = vector.load %arg1[%c0_1, %c0_2] : memref<1024x32xbf16, #tpu.memory_space<vmem>>, vector<1024x32xbf16>
    %cst = arith.constant dense<0.000000e+00> : vector<8x32xf32>
    %3 = tpu.matmul %1, %2, %cst {dimension_numbers = #tpu.dot_dimension_numbers<[1], [0], [0], [1], [0, 0, 1, 1], [], []>} : vector<8x1024xbf16>, vector<1024x32xbf16>, vector<8x32xf32> -> vector<8x32xf32>
    %c0_3 = arith.constant 0 : index
    %c0_4 = arith.constant 0 : index
    %4 = vector.load %arg2[%c0_3, %c0_4] : memref<1x32xf32, #tpu.memory_space<vmem>>, vector<1x32xf32>
    %5 = vector.broadcast %4 : vector<1x32xf32> to vector<8x32xf32>
    %6 = arith.addf %3, %5 : vector<8x32xf32>
    %c0_5 = arith.constant 0 : index
    %c0_6 = arith.constant 0 : index
    %7 = vector.load %arg3[%c0_5, %c0_6] : memref<8x32xf32, #tpu.memory_space<vmem>>, vector<8x32xf32>
    tpu.vector_store %arg3[%c0_5, %c0_6], %6 {strides = array<i32>} : memref<8x32xf32, #tpu.memory_space<vmem>>, vector<8x32xf32>,
    return
  }
}

</mosaic_0001>

<llo_original>
// kernel: tpu_custom_call.1
$region0: #{tpu_custom_call.1}
  #allocation0 [shape = 'u32[]', space=smem, size = 0x4, offset = 0x4, fixed_abs, tag = 'smem constant byte address 0x4 - core index']
  #allocation1 [shape = 'u32[72,128]{1,0:T(1,128)}', space=vmem, size = 0x9000, scoped, tag = 'internal scratch']
  %s0 = inlined_call_operand.vmem [shape: f32[8,1024], index: 0, kind: input, shape index: {}]
  %s1 = inlined_call_operand.vmem [shape: bf16[1024,32], index: 1, kind: input, shape index: {}]
  %s2 = inlined_call_operand.vmem [shape: f32[1,32], index: 2, kind: input, shape index: {}]
  %s3 = inlined_call_operand.hbm [shape: f32[8,32], index: 3, kind: output, shape index: {}]
  %s4 = sld [smem:[#allocation0]]
  $region22: #{tpu_custom_call.1} parent=0
    _
  %s6 = ssub.s32 1, %s4
  %s7 = scalar_select 0, %s6, %s4
  $region1: #{tpu_custom_call.1} parent=0
    #allocation2 [shape = 'u8[4096]{0}', space=vmem, size = 0x1000, scoped, tag = 'output window, operand 0, single buffered']
    #allocation3 [shape = 's32[1]{0}', space=sflag, size = 0x4, scoped, tag = 'scoped memory for tpu_custom_call.1']
    %8 = vsyncpa [#allocation3], 0
    // Predicated region
    $region2: #{tpu_custom_call.1} parent=1 // pred_check
      _
    $region3: #{tpu_custom_call.1} parent=1 // pred_check_branch
      %10 = sbr.rel (0) target = $region5
    $region4: #{tpu_custom_call.1} parent=1 // pred_region
      _
    $region5: #{tpu_custom_call.1} parent=1 // pred_fallthru
      _
    // Predicated region
    $region6: #{tpu_custom_call.1} parent=1 // pred_check
      _
    $region7: #{tpu_custom_call.1} parent=1 // pred_check_branch
      %12 = sbr.rel (0) target = $region9
    $region8: #{tpu_custom_call.1} parent=1 // pred_region
      _
    $region9: #{tpu_custom_call.1} parent=1 // pred_fallthru
      _
    // Predicated region
    $region10: #{tpu_custom_call.1} parent=1 // pred_check
      _
    $region11: #{tpu_custom_call.1} parent=1 // pred_check_branch
      %14 = sbr.rel (0) target = $region13
    $region12: #{tpu_custom_call.1} parent=1 // pred_region
      _
    $region13: #{tpu_custom_call.1} parent=1 // pred_fallthru
      _
    %v15 = vld [vmem:[%s0] sm:$0xff]
    %v16 = vld [vmem:[%s0 + $0x8] sm:$0xff]
    %v17 = vld [vmem:[%s0 + $0x10] sm:$0xff]
    %v18 = vld [vmem:[%s0 + $0x18] sm:$0xff]
    %v19 = vld [vmem:[%s0 + $0x20] sm:$0xff]
    %v20 = vld [vmem:[%s0 + $0x28] sm:$0xff]
    %v21 = vld [vmem:[%s0 + $0x30] sm:$0xff]
    %v22 = vld [vmem:[%s0 + $0x38] sm:$0xff]
    %v23 = vpack.c.bf16 %v15, %v15
    %v24 = vpack.c.bf16 %v16, %v16
    %v25 = vpack.c.bf16 %v17, %v17
    %v26 = vpack.c.bf16 %v18, %v18
    %v27 = vpack.c.bf16 %v19, %v19
    %v28 = vpack.c.bf16 %v20, %v20
    %v29 = vpack.c.bf16 %v21, %v21
    %v30 = vpack.c.bf16 %v22, %v22
    %v31 = vld [vmem:[%s1] sm:$0xf]
    %v32 = vld [vmem:[%s1 + $0x4] sm:$0xf]
    %v33 = vld [vmem:[%s1 + $0x8] sm:$0xf]
    %v34 = vld [vmem:[%s1 + $0xc] sm:$0xf]
    %v35 = vld [vmem:[%s1 + $0x10] sm:$0xf]
    %v36 = vld [vmem:[%s1 + $0x14] sm:$0xf]
    %v37 = vld [vmem:[%s1 + $0x18] sm:$0xf]
    %v38 = vld [vmem:[%s1 + $0x1c] sm:$0xf]
    %v39 = vld [vmem:[%s1 + $0x20] sm:$0xf]
    %v40 = vld [vmem:[%s1 + $0x24] sm:$0xf]
    %v41 = vld [vmem:[%s1 + $0x28] sm:$0xf]
    %v42 = vld [vmem:[%s1 + $0x2c] sm:$0xf]
    %v43 = vld [vmem:[%s1 + $0x30] sm:$0xf]
    %v44 = vld [vmem:[%s1 + $0x34] sm:$0xf]
    %v45 = vld [vmem:[%s1 + $0x38] sm:$0xf]
    %v46 = vld [vmem:[%s1 + $0x3c] sm:$0xf]
    %v47 = vld [vmem:[%s1 + $0x40] sm:$0xf]
    %v48 = vld [vmem:[%s1 + $0x44] sm:$0xf]
    %v49 = vld [vmem:[%s1 + $0x48] sm:$0xf]
    %v50 = vld [vmem:[%s1 + $0x4c] sm:$0xf]
    %v51 = vld [vmem:[%s1 + $0x50] sm:$0xf]
    %v52 = vld [vmem:[%s1 + $0x54] sm:$0xf]
    %v53 = vld [vmem:[%s1 + $0x58] sm:$0xf]
    %v54 = vld [vmem:[%s1 + $0x5c] sm:$0xf]
    %v55 = vld [vmem:[%s1 + $0x60] sm:$0xf]
    %v56 = vld [vmem:[%s1 + $0x64] sm:$0xf]
    %v57 = vld [vmem:[%s1 + $0x68] sm:$0xf]
    %v58 = vld [vmem:[%s1 + $0x6c] sm:$0xf]
    %v59 = vld [vmem:[%s1 + $0x70] sm:$0xf]
    %v60 = vld [vmem:[%s1 + $0x74] sm:$0xf]
    %v61 = vld [vmem:[%s1 + $0x78] sm:$0xf]
    %v62 = vld [vmem:[%s1 + $0x7c] sm:$0xf]
    %v63 = vld [vmem:[%s1 + $0x80] sm:$0xf]
    %v64 = vld [vmem:[%s1 + $0x84] sm:$0xf]
    %v65 = vld [vmem:[%s1 + $0x88] sm:$0xf]
    %v66 = vld [vmem:[%s1 + $0x8c] sm:$0xf]
    %v67 = vld [vmem:[%s1 + $0x90] sm:$0xf]
    %v68 = vld [vmem:[%s1 + $0x94] sm:$0xf]
    %v69 = vld [vmem:[%s1 + $0x98] sm:$0xf]
    %v70 = vld [vmem:[%s1 + $0x9c] sm:$0xf]
    %v71 = vld [vmem:[%s1 + $0xa0] sm:$0xf]
    %v72 = vld [vmem:[%s1 + $0xa4] sm:$0xf]
    %v73 = vld [vmem:[%s1 + $0xa8] sm:$0xf]
    %v74 = vld [vmem:[%s1 + $0xac] sm:$0xf]
    %v75 = vld [vmem:[%s1 + $0xb0] sm:$0xf]
    %v76 = vld [vmem:[%s1 + $0xb4] sm:$0xf]
    %v77 = vld [vmem:[%s1 + $0xb8] sm:$0xf]
    %v78 = vld [vmem:[%s1 + $0xbc] sm:$0xf]
    %v79 = vld [vmem:[%s1 + $0xc0] sm:$0xf]
    %v80 = vld [vmem:[%s1 + $0xc4] sm:$0xf]
    %v81 = vld [vmem:[%s1 + $0xc8] sm:$0xf]
    %v82 = vld [vmem:[%s1 + $0xcc] sm:$0xf]
    %v83 = vld [vmem:[%s1 + $0xd0] sm:$0xf]
    %v84 = vld [vmem:[%s1 + $0xd4] sm:$0xf]
    %v85 = vld [vmem:[%s1 + $0xd8] sm:$0xf]
    %v86 = vld [vmem:[%s1 + $0xdc] sm:$0xf]
    %v87 = vld [vmem:[%s1 + $0xe0] sm:$0xf]
    %v88 = vld [vmem:[%s1 + $0xe4] sm:$0xf]
    %v89 = vld [vmem:[%s1 + $0xe8] sm:$0xf]
    %v90 = vld [vmem:[%s1 + $0xec] sm:$0xf]
    %v91 = vld [vmem:[%s1 + $0xf0] sm:$0xf]
    %v92 = vld [vmem:[%s1 + $0xf4] sm:$0xf]
    %v93 = vld [vmem:[%s1 + $0xf8] sm:$0xf]
    %v94 = vld [vmem:[%s1 + $0xfc] sm:$0xf]
    %v95 = vld [vmem:[%s1 + $0x100] sm:$0xf]
    %v96 = vld [vmem:[%s1 + $0x104] sm:$0xf]
    %v97 = vld [vmem:[%s1 + $0x108] sm:$0xf]
    %v98 = vld [vmem:[%s1 + $0x10c] sm:$0xf]
    %v99 = vld [vmem:[%s1 + $0x110] sm:$0xf]
    %v100 = vld [vmem:[%s1 + $0x114] sm:$0xf]
    %v101 = vld [vmem:[%s1 + $0x118] sm:$0xf]
    %v102 = vld [vmem:[%s1 + $0x11c] sm:$0xf]
    %v103 = vld [vmem:[%s1 + $0x120] sm:$0xf]
    %v104 = vld [vmem:[%s1 + $0x124] sm:$0xf]
    %v105 = vld [vmem:[%s1 + $0x128] sm:$0xf]
    %v106 = vld [vmem:[%s1 + $0x12c] sm:$0xf]
    %v107 = vld [vmem:[%s1 + $0x130] sm:$0xf]
    %v108 = vld [vmem:[%s1 + $0x134] sm:$0xf]
    %v109 = vld [vmem:[%s1 + $0x138] sm:$0xf]
    %v110 = vld [vmem:[%s1 + $0x13c] sm:$0xf]
    %v111 = vld [vmem:[%s1 + $0x140] sm:$0xf]
    %v112 = vld [vmem:[%s1 + $0x144] sm:$0xf]
    %v113 = vld [vmem:[%s1 + $0x148] sm:$0xf]
    %v114 = vld [vmem:[%s1 + $0x14c] sm:$0xf]
    %v115 = vld [vmem:[%s1 + $0x150] sm:$0xf]
    %v116 = vld [vmem:[%s1 + $0x154] sm:$0xf]
    %v117 = vld [vmem:[%s1 + $0x158] sm:$0xf]
    %v118 = vld [vmem:[%s1 + $0x15c] sm:$0xf]
    %v119 = vld [vmem:[%s1 + $0x160] sm:$0xf]
    %v120 = vld [vmem:[%s1 + $0x164] sm:$0xf]
    %v121 = vld [vmem:[%s1 + $0x168] sm:$0xf]
    %v122 = vld [vmem:[%s1 + $0x16c] sm:$0xf]
    %v123 = vld [vmem:[%s1 + $0x170] sm:$0xf]
    %v124 = vld [vmem:[%s1 + $0x174] sm:$0xf]
    %v125 = vld [vmem:[%s1 + $0x178] sm:$0xf]
    %v126 = vld [vmem:[%s1 + $0x17c] sm:$0xf]
    %v127 = vld [vmem:[%s1 + $0x180] sm:$0xf]
    %v128 = vld [vmem:[%s1 + $0x184] sm:$0xf]
    %v129 = vld [vmem:[%s1 + $0x188] sm:$0xf]
    %v130 = vld [vmem:[%s1 + $0x18c] sm:$0xf]
    %v131 = vld [vmem:[%s1 + $0x190] sm:$0xf]
    %v132 = vld [vmem:[%s1 + $0x194] sm:$0xf]
    %v133 = vld [vmem:[%s1 + $0x198] sm:$0xf]
    %v134 = vld [vmem:[%s1 + $0x19c] sm:$0xf]
    %v135 = vld [vmem:[%s1 + $0x1a0] sm:$0xf]
    %v136 = vld [vmem:[%s1 + $0x1a4] sm:$0xf]
    %v137 = vld [vmem:[%s1 + $0x1a8] sm:$0xf]
    %v138 = vld [vmem:[%s1 + $0x1ac] sm:$0xf]
    %v139 = vld [vmem:[%s1 + $0x1b0] sm:$0xf]
    %v140 = vld [vmem:[%s1 + $0x1b4] sm:$0xf]
    %v141 = vld [vmem:[%s1 + $0x1b8] sm:$0xf]
    %v142 = vld [vmem:[%s1 + $0x1bc] sm:$0xf]
    %v143 = vld [vmem:[%s1 + $0x1c0] sm:$0xf]
    %v144 = vld [vmem:[%s1 + $0x1c4] sm:$0xf]
    %v145 = vld [vmem:[%s1 + $0x1c8] sm:$0xf]
    %v146 = vld [vmem:[%s1 + $0x1cc] sm:$0xf]
    %v147 = vld [vmem:[%s1 + $0x1d0] sm:$0xf]
    %v148 = vld [vmem:[%s1 + $0x1d4] sm:$0xf]
    %v149 = vld [vmem:[%s1 + $0x1d8] sm:$0xf]
    %v150 = vld [vmem:[%s1 + $0x1dc] sm:$0xf]
    %v151 = vld [vmem:[%s1 + $0x1e0] sm:$0xf]
    %v152 = vld [vmem:[%s1 + $0x1e4] sm:$0xf]
    %v153 = vld [vmem:[%s1 + $0x1e8] sm:$0xf]
    %v154 = vld [vmem:[%s1 + $0x1ec] sm:$0xf]
    %v155 = vld [vmem:[%s1 + $0x1f0] sm:$0xf]
    %v156 = vld [vmem:[%s1 + $0x1f4] sm:$0xf]
    %v157 = vld [vmem:[%s1 + $0x1f8] sm:$0xf]
    %v158 = vld [vmem:[%s1 + $0x1fc] sm:$0xf]
    %v159 = vld [vmem:[%s2] sm:$0x1]
    %v161 = vperm.slane %v159, 0
    %v291 = vunpack.c.l.b16 %v31
    %v292 = vunpack.c.l.b16 %v32
    %v293 = vunpack.c.l.b16 %v33
    %v294 = vunpack.c.l.b16 %v34
    %v295 = vunpack.c.l.b16 %v35
    %v296 = vunpack.c.l.b16 %v36
    %v297 = vunpack.c.l.b16 %v37
    %v298 = vunpack.c.l.b16 %v38
    %v299 = vunpack.c.l.b16 %v39
    %v300 = vunpack.c.l.b16 %v40
    %v301 = vunpack.c.l.b16 %v41
    %v302 = vunpack.c.l.b16 %v42
    %v303 = vunpack.c.l.b16 %v43
    %v304 = vunpack.c.l.b16 %v44
    %v305 = vunpack.c.l.b16 %v45
    %v306 = vunpack.c.l.b16 %v46
    %v307 = vunpack.c.l.b16 %v47
    %v308 = vunpack.c.l.b16 %v48
    %v309 = vunpack.c.l.b16 %v49
    %v310 = vunpack.c.l.b16 %v50
    %v311 = vunpack.c.l.b16 %v51
    %v312 = vunpack.c.l.b16 %v52
    %v313 = vunpack.c.l.b16 %v53
    %v314 = vunpack.c.l.b16 %v54
    %v315 = vunpack.c.l.b16 %v55
    %v316 = vunpack.c.l.b16 %v56
    %v317 = vunpack.c.l.b16 %v57
    %v318 = vunpack.c.l.b16 %v58
    %v319 = vunpack.c.l.b16 %v59
    %v320 = vunpack.c.l.b16 %v60
    %v321 = vunpack.c.l.b16 %v61
    %v322 = vunpack.c.l.b16 %v62
    %v323 = vunpack.c.l.b16 %v63
    %v324 = vunpack.c.l.b16 %v64
    %v325 = vunpack.c.l.b16 %v65
    %v326 = vunpack.c.l.b16 %v66
    %v327 = vunpack.c.l.b16 %v67
    %v328 = vunpack.c.l.b16 %v68
    %v329 = vunpack.c.l.b16 %v69
    %v330 = vunpack.c.l.b16 %v70
    %v331 = vunpack.c.l.b16 %v71
    %v332 = vunpack.c.l.b16 %v72
    %v333 = vunpack.c.l.b16 %v73
    %v334 = vunpack.c.l.b16 %v74
    %v335 = vunpack.c.l.b16 %v75
    %v336 = vunpack.c.l.b16 %v76
    %v337 = vunpack.c.l.b16 %v77
    %v338 = vunpack.c.l.b16 %v78
    %v339 = vunpack.c.l.b16 %v79
    %v340 = vunpack.c.l.b16 %v80
    %v341 = vunpack.c.l.b16 %v81
    %v342 = vunpack.c.l.b16 %v82
    %v343 = vunpack.c.l.b16 %v83
    %v344 = vunpack.c.l.b16 %v84
    %v345 = vunpack.c.l.b16 %v85
    %v346 = vunpack.c.l.b16 %v86
    %v347 = vunpack.c.l.b16 %v87
    %v348 = vunpack.c.l.b16 %v88
    %v349 = vunpack.c.l.b16 %v89
    %v350 = vunpack.c.l.b16 %v90
    %v351 = vunpack.c.l.b16 %v91
    %v352 = vunpack.c.l.b16 %v92
    %v353 = vunpack.c.l.b16 %v93
    %v354 = vunpack.c.l.b16 %v94
    %v355 = vunpack.c.l.b16 %v95
    %v356 = vunpack.c.l.b16 %v96
    %v357 = vunpack.c.l.b16 %v97
    %v358 = vunpack.c.l.b16 %v98
    %v359 = vunpack.c.l.b16 %v99
    %v360 = vunpack.c.l.b16 %v100
    %v361 = vunpack.c.l.b16 %v101
    %v362 = vunpack.c.l.b16 %v102
    %v363 = vunpack.c.l.b16 %v103
    %v364 = vunpack.c.l.b16 %v104
    %v365 = vunpack.c.l.b16 %v105
    %v366 = vunpack.c.l.b16 %v106
    %v367 = vunpack.c.l.b16 %v107
    %v368 = vunpack.c.l.b16 %v108
    %v369 = vunpack.c.l.b16 %v109
    %v370 = vunpack.c.l.b16 %v110
    %v371 = vunpack.c.l.b16 %v111
    %v372 = vunpack.c.l.b16 %v112
    %v373 = vunpack.c.l.b16 %v113
    %v374 = vunpack.c.l.b16 %v114
    %v375 = vunpack.c.l.b16 %v115
    %v376 = vunpack.c.l.b16 %v116
    %v377 = vunpack.c.l.b16 %v117
    %v378 = vunpack.c.l.b16 %v118
    %v379 = vunpack.c.l.b16 %v119
    %v380 = vunpack.c.l.b16 %v120
    %v381 = vunpack.c.l.b16 %v121
    %v382 = vunpack.c.l.b16 %v122
    %v383 = vunpack.c.l.b16 %v123
    %v384 = vunpack.c.l.b16 %v124
    %v385 = vunpack.c.l.b16 %v125
    %v386 = vunpack.c.l.b16 %v126
    %v387 = vunpack.c.l.b16 %v127
    %v388 = vunpack.c.l.b16 %v128
    %v389 = vunpack.c.l.b16 %v129
    %v390 = vunpack.c.l.b16 %v130
    %v391 = vunpack.c.l.b16 %v131
    %v392 = vunpack.c.l.b16 %v132
    %v393 = vunpack.c.l.b16 %v133
    %v394 = vunpack.c.l.b16 %v134
    %v395 = vunpack.c.l.b16 %v135
    %v396 = vunpack.c.l.b16 %v136
    %v397 = vunpack.c.l.b16 %v137
    %v398 = vunpack.c.l.b16 %v138
    %v399 = vunpack.c.l.b16 %v139
    %v400 = vunpack.c.l.b16 %v140
    %v401 = vunpack.c.l.b16 %v141
    %v402 = vunpack.c.l.b16 %v142
    %v403 = vunpack.c.l.b16 %v143
    %v404 = vunpack.c.l.b16 %v144
    %v405 = vunpack.c.l.b16 %v145
    %v406 = vunpack.c.l.b16 %v146
    %v407 = vunpack.c.l.b16 %v147
    %v408 = vunpack.c.l.b16 %v148
    %v409 = vunpack.c.l.b16 %v149
    %v410 = vunpack.c.l.b16 %v150
    %v411 = vunpack.c.l.b16 %v151
    %v412 = vunpack.c.l.b16 %v152
    %v413 = vunpack.c.l.b16 %v153
    %v414 = vunpack.c.l.b16 %v154
    %v415 = vunpack.c.l.b16 %v155
    %v416 = vunpack.c.l.b16 %v156
    %v417 = vunpack.c.l.b16 %v157
    %v418 = vunpack.c.l.b16 %v158
    %v419 = vpack.c.b16 %v292, %v291
    %v420 = vpack.c.b16 %v294, %v293
    %v421 = vpack.c.b16 %v296, %v295
    %v422 = vpack.c.b16 %v298, %v297
    %v423 = vpack.c.b16 %v300, %v299
    %v424 = vpack.c.b16 %v302, %v301
    %v425 = vpack.c.b16 %v304, %v303
    %v426 = vpack.c.b16 %v306, %v305
    %v427 = vpack.c.b16 %v308, %v307
    %v428 = vpack.c.b16 %v310, %v309
    %v429 = vpack.c.b16 %v312, %v311
    %v430 = vpack.c.b16 %v314, %v313
    %v431 = vpack.c.b16 %v316, %v315
    %v432 = vpack.c.b16 %v318, %v317
    %v433 = vpack.c.b16 %v320, %v319
    %v434 = vpack.c.b16 %v322, %v321
    %v435 = vpack.c.b16 %v324, %v323
    %v436 = vpack.c.b16 %v326, %v325
    %v437 = vpack.c.b16 %v328, %v327
    %v438 = vpack.c.b16 %v330, %v329
    %v439 = vpack.c.b16 %v332, %v331
    %v440 = vpack.c.b16 %v334, %v333
    %v441 = vpack.c.b16 %v336, %v335
    %v442 = vpack.c.b16 %v338, %v337
    %v443 = vpack.c.b16 %v340, %v339
    %v444 = vpack.c.b16 %v342, %v341
    %v445 = vpack.c.b16 %v344, %v343
    %v446 = vpack.c.b16 %v346, %v345
    %v447 = vpack.c.b16 %v348, %v347
    %v448 = vpack.c.b16 %v350, %v349
    %v449 = vpack.c.b16 %v352, %v351
    %v450 = vpack.c.b16 %v354, %v353
    %v451 = vpack.c.b16 %v356, %v355
    %v452 = vpack.c.b16 %v358, %v357
    %v453 = vpack.c.b16 %v360, %v359
    %v454 = vpack.c.b16 %v362, %v361
    %v455 = vpack.c.b16 %v364, %v363
    %v456 = vpack.c.b16 %v366, %v365
    %v457 = vpack.c.b16 %v368, %v367
    %v458 = vpack.c.b16 %v370, %v369
    %v459 = vpack.c.b16 %v372, %v371
    %v460 = vpack.c.b16 %v374, %v373
    %v461 = vpack.c.b16 %v376, %v375
    %v462 = vpack.c.b16 %v378, %v377
    %v463 = vpack.c.b16 %v380, %v379
    %v464 = vpack.c.b16 %v382, %v381
    %v465 = vpack.c.b16 %v384, %v383
    %v466 = vpack.c.b16 %v386, %v385
    %v467 = vpack.c.b16 %v388, %v387
    %v468 = vpack.c.b16 %v390, %v389
    %v469 = vpack.c.b16 %v392, %v391
    %v470 = vpack.c.b16 %v394, %v393
    %v471 = vpack.c.b16 %v396, %v395
    %v472 = vpack.c.b16 %v398, %v397
    %v473 = vpack.c.b16 %v400, %v399
    %v474 = vpack.c.b16 %v402, %v401
    %v475 = vpack.c.b16 %v404, %v403
    %v476 = vpack.c.b16 %v406, %v405
    %v477 = vpack.c.b16 %v408, %v407
    %v478 = vpack.c.b16 %v410, %v409
    %v479 = vpack.c.b16 %v412, %v411
    %v480 = vpack.c.b16 %v414, %v413
    %v481 = vpack.c.b16 %v416, %v415
    %v482 = vpack.c.b16 %v418, %v417
    %547 = vmatpush.bf16.msra.mxu0 %v426
    %548 = vmatpush.bf16.msra.mxu0 %v425
    %549 = vmatpush.bf16.msra.mxu0 %v424
    %550 = vmatpush.bf16.msra.mxu0 %v423
    %551 = vmatpush.bf16.msra.mxu0 %v422
    %552 = vmatpush.bf16.msra.mxu0 %v421
    %553 = vmatpush.bf16.msra.mxu0 %v420
    %554 = vmatpush.bf16.msra.mxu0 %v419
    %555 = vmatmul.bf16.gmra.mxu0 %v23
    %v556 = vpop.f32.mrf.mxu0
    %v557 = vadd.f32 %v161, %v556
    %v558 = vpop.f32.mrf.mxu0
    %559 = vdwg.mxu0
    %560 = vmatpush.bf16.msra.mxu0 %v434
    %561 = vmatpush.bf16.msra.mxu0 %v433
    %562 = vmatpush.bf16.msra.mxu0 %v432
    %563 = vmatpush.bf16.msra.mxu0 %v431
    %564 = vmatpush.bf16.msra.mxu0 %v430
    %565 = vmatpush.bf16.msra.mxu0 %v429
    %566 = vmatpush.bf16.msra.mxu0 %v428
    %567 = vmatpush.bf16.msra.mxu0 %v427
    %568 = vmatmul.bf16.gmra.mxu0 %v24
    %v569 = vpop.f32.mrf.mxu0
    %v570 = vadd.f32 %v557, %v569
    %v571 = vpop.f32.mrf.mxu0
    %572 = vdwg.mxu0
    %573 = vmatpush.bf16.msra.mxu0 %v442
    %574 = vmatpush.bf16.msra.mxu0 %v441
    %575 = vmatpush.bf16.msra.mxu0 %v440
    %576 = vmatpush.bf16.msra.mxu0 %v439
    %577 = vmatpush.bf16.msra.mxu0 %v438
    %578 = vmatpush.bf16.msra.mxu0 %v437
    %579 = vmatpush.bf16.msra.mxu0 %v436
    %580 = vmatpush.bf16.msra.mxu0 %v435
    %581 = vmatmul.bf16.gmra.mxu0 %v25
    %v582 = vpop.f32.mrf.mxu0
    %v583 = vadd.f32 %v570, %v582
    %v584 = vpop.f32.mrf.mxu0
    %585 = vdwg.mxu0
    %586 = vmatpush.bf16.msra.mxu0 %v450
    %587 = vmatpush.bf16.msra.mxu0 %v449
    %588 = vmatpush.bf16.msra.mxu0 %v448
    %589 = vmatpush.bf16.msra.mxu0 %v447
    %590 = vmatpush.bf16.msra.mxu0 %v446
    %591 = vmatpush.bf16.msra.mxu0 %v445
    %592 = vmatpush.bf16.msra.mxu0 %v444
    %593 = vmatpush.bf16.msra.mxu0 %v443
    %594 = vmatmul.bf16.gmra.mxu0 %v26
    %v595 = vpop.f32.mrf.mxu0
    %v596 = vadd.f32 %v583, %v595
    %v597 = vpop.f32.mrf.mxu0
    %598 = vdwg.mxu0
    %599 = vmatpush.bf16.msra.mxu0 %v458
    %600 = vmatpush.bf16.msra.mxu0 %v457
    %601 = vmatpush.bf16.msra.mxu0 %v456
    %602 = vmatpush.bf16.msra.mxu0 %v455
    %603 = vmatpush.bf16.msra.mxu0 %v454
    %604 = vmatpush.bf16.msra.mxu0 %v453
    %605 = vmatpush.bf16.msra.mxu0 %v452
    %606 = vmatpush.bf16.msra.mxu0 %v451
    %607 = vmatmul.bf16.gmra.mxu0 %v27
    %v608 = vpop.f32.mrf.mxu0
    %v609 = vadd.f32 %v596, %v608
    %v610 = vpop.f32.mrf.mxu0
    %611 = vdwg.mxu0
    %612 = vmatpush.bf16.msra.mxu0 %v466
    %613 = vmatpush.bf16.msra.mxu0 %v465
    %614 = vmatpush.bf16.msra.mxu0 %v464
    %615 = vmatpush.bf16.msra.mxu0 %v463
    %616 = vmatpush.bf16.msra.mxu0 %v462
    %617 = vmatpush.bf16.msra.mxu0 %v461
    %618 = vmatpush.bf16.msra.mxu0 %v460
    %619 = vmatpush.bf16.msra.mxu0 %v459
    %620 = vmatmul.bf16.gmra.mxu0 %v28
    %v621 = vpop.f32.mrf.mxu0
    %v622 = vadd.f32 %v609, %v621
    %v623 = vpop.f32.mrf.mxu0
    %624 = vdwg.mxu0
    %625 = vmatpush.bf16.msra.mxu0 %v474
    %626 = vmatpush.bf16.msra.mxu0 %v473
    %627 = vmatpush.bf16.msra.mxu0 %v472
    %628 = vmatpush.bf16.msra.mxu0 %v471
    %629 = vmatpush.bf16.msra.mxu0 %v470
    %630 = vmatpush.bf16.msra.mxu0 %v469
    %631 = vmatpush.bf16.msra.mxu0 %v468
    %632 = vmatpush.bf16.msra.mxu0 %v467
    %633 = vmatmul.bf16.gmra.mxu0 %v29
    %v634 = vpop.f32.mrf.mxu0
    %v635 = vadd.f32 %v622, %v634
    %v636 = vpop.f32.mrf.mxu0
    %637 = vdwg.mxu0
    %638 = vmatpush.bf16.msra.mxu0 %v482
    %639 = vmatpush.bf16.msra.mxu0 %v481
    %640 = vmatpush.bf16.msra.mxu0 %v480
    %641 = vmatpush.bf16.msra.mxu0 %v479
    %642 = vmatpush.bf16.msra.mxu0 %v478
    %643 = vmatpush.bf16.msra.mxu0 %v477
    %644 = vmatpush.bf16.msra.mxu0 %v476
    %645 = vmatpush.bf16.msra.mxu0 %v475
    %646 = vmatmul.bf16.gmra.mxu0 %v30
    %v647 = vpop.f32.mrf.mxu0
    %v648 = vadd.f32 %v635, %v647
    %v649 = vpop.f32.mrf.mxu0
    %650 = vdwg.mxu0
    %vm651 = vcmask 261120
    %652 = vst.msk [vmem:[#allocation2] sm:$0xff] %vm651, %v648
    // Predicated region
    $region14: #{tpu_custom_call.1} parent=1 // pred_check
      _
    $region15: #{tpu_custom_call.1} parent=1 // pred_check_branch
      %654 = sbr.rel (0) target = $region17
    $region16: #{tpu_custom_call.1} parent=1 // pred_region
      %656 = vsyncadd [#allocation3], 0
      %s658 = sshll.u32 [#allocation2], 4
      %s659 = int_to_ptr.vmem [resolvable:$true] %s658
      %s660 = sshll.u32 %s3, 4
      %s661 = int_to_ptr.hbm [resolvable:$true] %s660
      %663 = dma.vmem_to_hbm [thread:$0]  %s659, 128, %s661, [#allocation3]
    $region17: #{tpu_custom_call.1} parent=1 // pred_fallthru
      _
    // Predicated region
    $region18: #{tpu_custom_call.1} parent=1 // pred_check
      _
    $region19: #{tpu_custom_call.1} parent=1 // pred_check_branch
      %665 = sbr.rel (0) target = $region21
    $region20: #{tpu_custom_call.1} parent=1 // pred_region
      %667 = dma.done [#allocation3], 128
    $region21: #{tpu_custom_call.1} parent=1 // pred_fallthru
      _
    %668 = vsyncpa [#allocation3], 1

</llo_original>
